<compile_context>
chip_gen: v5e
topology: v5e:2x2
jax: 0.10.0
libtpu: 0.0.40
codegen_flags: <defaults>
</compile_context>

<pallas_src>
import jax
import jax.numpy as jnp
from jax.experimental import pallas as pl
from jax.experimental.pallas import tpu as pltpu


def _attentive_pool_kernel(w_ref, x_ref, o_ref, m_scr, d_scr, acc_scr):
    # w_ref:   (C, C)                conv1x1 weight (out_ch, in_ch), native dtype
    # x_ref:   (block_b, C, tL)      tile of the input slab, native dtype
    # o_ref:   (block_b, C, 1)       pooled output (written only at finalize)
    # scratch: (block_b, C, 1) f32   running max / denom / weighted accumulator
    li = pl.program_id(1)

    @pl.when(li == 0)
    def _init():
        m_scr[...] = jnp.full_like(m_scr, -jnp.inf)
        d_scr[...] = jnp.zeros_like(d_scr)
        acc_scr[...] = jnp.zeros_like(acc_scr)

    w = w_ref[...]                                 # (C, C), native dtype (bf16 OK)
    block_b = x_ref.shape[0]
    for b in range(block_b):                       # static unroll; block_b is small
        xb = x_ref[b]                              # (C, tL), native dtype
        # 1x1 conv == channel-mixing matmul on the MXU, f32 accumulation.
        logits = jnp.dot(w, xb, preferred_element_type=jnp.float32)   # (C, tL) f32

        # Online (streaming) softmax statistics over the length axis.
        m_prev = m_scr[b]                                              # (C, 1)
        m_new = jnp.maximum(m_prev, jnp.max(logits, axis=-1, keepdims=True))
        alpha = jnp.exp(m_prev - m_new)                                # (C, 1)
        p = jnp.exp(logits - m_new)                                    # (C, tL)
        d_scr[b] = alpha * d_scr[b] + jnp.sum(p, axis=-1, keepdims=True)
        acc_scr[b] = alpha * acc_scr[b] + jnp.sum(
            xb.astype(jnp.float32) * p, axis=-1, keepdims=True)
        m_scr[b] = m_new

    @pl.when(li == pl.num_programs(1) - 1)
    def _finalize():
        # Fused normalization: one divide on (block_b, C, 1).  Exact reciprocal
        # (not approx) keeps the 1e-5 reference tolerance comfortably.
        pooled = acc_scr[...] * pl.reciprocal(d_scr[...], approx=False)
        o_ref[...] = pooled.astype(o_ref.dtype)


def _choose_tiles(B, C, L, itemsize):
    """Pick (block_b, block_l) so one x tile stays ~<= 8 MiB (double-buffered ~16 MiB)."""
    budget = 8 * 1024 * 1024
    # Length tile: prefer full L, else the largest 128-multiple divisor that fits.
    if C * L * itemsize <= budget:
        block_l = L
    else:
        block_l = L  # fallback when L has no aligned divisor that fits
        for cand in (4096, 2048, 1024, 512, 256, 128):
            if L % cand == 0 and C * cand * itemsize <= budget:
                block_l = cand
                break
    # Batch tile: largest divisor of B (capped at 8) that fits the budget; when
    # B >= 4 keep at least 2 batch blocks so both v7x TensorCores get work.
    cap = 8 if B < 4 else min(8, B // 2)
    block_b = 1
    for cand in range(min(cap, B), 0, -1):
        if B % cand == 0 and cand * C * block_l * itemsize <= budget:
            block_b = cand
            break
    return block_b, block_l


def attentive_pooling_1d(x, conv_weight, *, block_b=None, block_l=None):
    """x: (B, C, L); conv_weight: (C, C) or (C, C, 1) (out_ch, in_ch[, 1]). Returns (B, C, 1)."""
    B, C, L = x.shape
    if conv_weight.ndim == 3:                      # PyTorch Conv1d weight layout
        conv_weight = conv_weight[:, :, 0]
    assert conv_weight.shape == (C, C), conv_weight.shape

    auto_b, auto_l = _choose_tiles(B, C, L, x.dtype.itemsize)
    block_b = auto_b if block_b is None else block_b
    block_l = auto_l if block_l is None else block_l
    assert B % block_b == 0 and L % block_l == 0, (block_b, block_l)

    # Explicit scoped-VMEM budget: double-buffered x tile + weight + scratch/output
    # (lane-padded), plus margin.  Floor 32 MiB, cap 48 MiB (valid on v5e/v6e/v7x).
    x_tile_bytes = block_b * C * block_l * x.dtype.itemsize
    w_bytes = C * C * conv_weight.dtype.itemsize
    pad_bytes = block_b * C * 128 * 4
    vmem_limit = int(min(max(2 * x_tile_bytes + 2 * w_bytes + 4 * pad_bytes + (4 << 20),
                             32 << 20), 48 << 20))

    grid = (B // block_b, L // block_l)
    return pl.pallas_call(
        _attentive_pool_kernel,
        out_shape=jax.ShapeDtypeStruct((B, C, 1), x.dtype),
        grid_spec=pltpu.PrefetchScalarGridSpec(
            num_scalar_prefetch=0,
            grid=grid,
            in_specs=[
                # Weight: constant block index -> fetched once, stays resident.
                # TODO(synk): for very large C on v7x, pipeline_mode=pl.Buffered(1)
                # here would reclaim the second (unused) weight buffer.
                pl.BlockSpec((C, C), lambda bb, li: (0, 0)),
                pl.BlockSpec((block_b, C, block_l), lambda bb, li: (bb, 0, li)),
            ],
            out_specs=pl.BlockSpec((block_b, C, 1), lambda bb, li: (bb, 0, 0)),
            scratch_shapes=[
                pltpu.VMEM((block_b, C, 1), jnp.float32),   # running max
                pltpu.VMEM((block_b, C, 1), jnp.float32),   # running denominator
                pltpu.VMEM((block_b, C, 1), jnp.float32),   # running weighted sum
            ],
        ),
        compiler_params=pltpu.CompilerParams(
            dimension_semantics=("parallel", "arbitrary"),
            vmem_limit_bytes=vmem_limit,
        ),
    )(conv_weight, x)


def _reference(x, w):
    logits = jnp.einsum("oc,bcl->bol", w, x)
    attn = jax.nn.softmax(logits, axis=-1)
    return jnp.sum(x * attn, axis=-1, keepdims=True)


if __name__ == "__main__":
    key = jax.random.PRNGKey(0)

    # --- Test 1: small shapes, single grid step (whole slab per step). ---
    B, C, L = 2, 8, 16
    kx, kw, kx2 = jax.random.split(key, 3)
    x = jax.random.normal(kx, (B, C, L), dtype=jnp.float32)
    conv_weight = jax.random.normal(kw, (C, C), dtype=jnp.float32) * (1.0 / jnp.sqrt(C))

    out = attentive_pooling_1d(x, conv_weight)
    out = jax.block_until_ready(out)
    ref = _reference(x, conv_weight)
    assert out.shape == (B, C, 1), out.shape
    assert jnp.allclose(out, ref, atol=1e-5, rtol=1e-5), "mismatch vs reference (test 1)"

    # --- Test 2: exercises the L-tiled online-softmax path (grid = (2, 2)). ---
    B2, L2 = 2, 256
    x2 = jax.random.normal(kx2, (B2, C, L2), dtype=jnp.float32)
    out2 = attentive_pooling_1d(x2, conv_weight, block_b=1, block_l=128)
    out2 = jax.block_until_ready(out2)
    ref2 = _reference(x2, conv_weight)
    assert out2.shape == (B2, C, 1), out2.shape
    assert jnp.allclose(out2, ref2, atol=1e-5, rtol=1e-5), "mismatch vs reference (test 2)"

    print("KERNEL_OK")
</pallas_src>

<mosaic_0001>
module attributes {stable_mosaic.version = 11 : i64} {
  func.func @_attentive_pool_kernel(%arg0: i32, %arg1: i32, %arg2: memref<8x8xf32, #tpu.memory_space<vmem>>, %arg3: memref<2x8x16xf32, #tpu.memory_space<vmem>>, %arg4: memref<2x8x1xf32, #tpu.memory_space<vmem>>, %arg5: memref<2x8x1xf32, #tpu.memory_space<vmem>>, %arg6: memref<2x8x1xf32, #tpu.memory_space<vmem>>, %arg7: memref<2x8x1xf32, #tpu.memory_space<vmem>>) attributes {dimension_semantics = [#tpu.dimension_semantics<parallel>, #tpu.dimension_semantics<arbitrary>], iteration_bounds = array<i64: 1, 1>, scalar_prefetch = 0 : i64, scratch_operands = 3 : i64, tpu.core_type = #tpu.core_type<tc>, window_params = [{pipeline_mode = #tpu.pipeline_mode<synchronous>, transform_indices = @transform_0, window_bounds = array<i64: 8, 8>}, {transform_indices = @transform_1, window_bounds = array<i64: 2, 8, 16>}, {transform_indices = @transform_2, window_bounds = array<i64: 2, 8, 1>}]} {
    %c0_i32 = arith.constant 0 : i32
    %0 = arith.cmpi eq, %arg1, %c0_i32 : i32
    %1 = arith.extui %0 : i1 to i32
    %c0_i32_0 = arith.constant 0 : i32
    %2 = arith.cmpi ne, %1, %c0_i32_0 : i32
    scf.if %2 {
      %cst_52 = arith.constant 0xFF800000 : f32
      %77 = vector.broadcast %cst_52 : f32 to vector<2x8x1xf32>
      %c0_53 = arith.constant 0 : index
      %c0_54 = arith.constant 0 : index
      %c0_55 = arith.constant 0 : index
      %78 = vector.load %arg5[%c0_53, %c0_54, %c0_55] : memref<2x8x1xf32, #tpu.memory_space<vmem>>, vector<2x8x1xf32>
      tpu.vector_store %arg5[%c0_53, %c0_54, %c0_55], %77 {strides = array<i32>} : memref<2x8x1xf32, #tpu.memory_space<vmem>>, vector<2x8x1xf32>,
      %cst_56 = arith.constant 0.000000e+00 : f32
      %79 = vector.broadcast %cst_56 : f32 to vector<2x8x1xf32>
      %c0_57 = arith.constant 0 : index
      %c0_58 = arith.constant 0 : index
      %c0_59 = arith.constant 0 : index
      %80 = vector.load %arg6[%c0_57, %c0_58, %c0_59] : memref<2x8x1xf32, #tpu.memory_space<vmem>>, vector<2x8x1xf32>
      tpu.vector_store %arg6[%c0_57, %c0_58, %c0_59], %79 {strides = array<i32>} : memref<2x8x1xf32, #tpu.memory_space<vmem>>, vector<2x8x1xf32>,
      %cst_60 = arith.constant 0.000000e+00 : f32
      %81 = vector.broadcast %cst_60 : f32 to vector<2x8x1xf32>
      %c0_61 = arith.constant 0 : index
      %c0_62 = arith.constant 0 : index
      %c0_63 = arith.constant 0 : index
      %82 = vector.load %arg7[%c0_61, %c0_62, %c0_63] : memref<2x8x1xf32, #tpu.memory_space<vmem>>, vector<2x8x1xf32>
      tpu.vector_store %arg7[%c0_61, %c0_62, %c0_63], %81 {strides = array<i32>} : memref<2x8x1xf32, #tpu.memory_space<vmem>>, vector<2x8x1xf32>,
    } else {
    }
    %c0 = arith.constant 0 : index
    %c0_1 = arith.constant 0 : index
    %3 = vector.load %arg2[%c0, %c0_1] : memref<8x8xf32, #tpu.memory_space<vmem>>, vector<8x8xf32>
    %c0_2 = arith.constant 0 : index
    %c0_3 = arith.constant 0 : index
    %c0_4 = arith.constant 0 : index
    %4 = vector.load %arg3[%c0_2, %c0_3, %c0_4] : memref<2x8x16xf32, #tpu.memory_space<vmem>>, vector<1x8x16xf32>
    %5 = vector.shape_cast %4 : vector<1x8x16xf32> to vector<8x16xf32>
    %cst = arith.constant dense<0.000000e+00> : vector<8x16xf32>
    %6 = tpu.matmul %3, %5, %cst {dimension_numbers = #tpu.dot_dimension_numbers<[1], [0], [0], [1], [0, 0, 1, 1], [], []>} : vector<8x8xf32>, vector<8x16xf32>, vector<8x16xf32> -> vector<8x16xf32>
    %c0_5 = arith.constant 0 : index
    %c0_6 = arith.constant 0 : index
    %c0_7 = arith.constant 0 : index
    %7 = vector.load %arg5[%c0_5, %c0_6, %c0_7] : memref<2x8x1xf32, #tpu.memory_space<vmem>>, vector<1x8x1xf32>
    %8 = vector.shape_cast %7 : vector<1x8x1xf32> to vector<8x1xf32>
    %cst_8 = arith.constant dense<0xFF800000> : vector<8xf32>
    %9 = vector.multi_reduction <maximumf>, %6, %cst_8 [1] : vector<8x16xf32> to vector<8xf32>
    %10 = vector.shape_cast %9 : vector<8xf32> to vector<8x1xf32>
    %11 = arith.maximumf %8, %10 : vector<8x1xf32>
    %12 = arith.subf %8, %11 : vector<8x1xf32>
    %13 = math.exp %12 : vector<8x1xf32>
    %14 = vector.broadcast %11 : vector<8x1xf32> to vector<8x16xf32>
    %15 = arith.subf %6, %14 : vector<8x16xf32>
    %16 = math.exp %15 : vector<8x16xf32>
    %c0_9 = arith.constant 0 : index
    %c0_10 = arith.constant 0 : index
    %c0_11 = arith.constant 0 : index
    %17 = vector.load %arg6[%c0_9, %c0_10, %c0_11] : memref<2x8x1xf32, #tpu.memory_space<vmem>>, vector<1x8x1xf32>
    %18 = vector.shape_cast %17 : vector<1x8x1xf32> to vector<8x1xf32>
    %19 = arith.mulf %13, %18 : vector<8x1xf32>
    %cst_12 = arith.constant dense<0.000000e+00> : vector<8xf32>
    %20 = vector.multi_reduction <add>, %16, %cst_12 [1] : vector<8x16xf32> to vector<8xf32>
    %21 = vector.shape_cast %20 : vector<8xf32> to vector<8x1xf32>
    %22 = arith.addf %19, %21 : vector<8x1xf32>
    %c0_13 = arith.constant 0 : index
    %c0_14 = arith.constant 0 : index
    %c0_15 = arith.constant 0 : index
    %23 = vector.load %arg6[%c0_13, %c0_14, %c0_15] : memref<2x8x1xf32, #tpu.memory_space<vmem>>, vector<1x8x1xf32>
    %24 = vector.shape_cast %23 : vector<1x8x1xf32> to vector<8x1xf32>
    %25 = vector.shape_cast %22 : vector<8x1xf32> to vector<1x8x1xf32>
    tpu.vector_store %arg6[%c0_13, %c0_14, %c0_15], %25 {strides = array<i32>} : memref<2x8x1xf32, #tpu.memory_space<vmem>>, vector<1x8x1xf32>,
    %c0_16 = arith.constant 0 : index
    %c0_17 = arith.constant 0 : index
    %c0_18 = arith.constant 0 : index
    %26 = vector.load %arg7[%c0_16, %c0_17, %c0_18] : memref<2x8x1xf32, #tpu.memory_space<vmem>>, vector<1x8x1xf32>
    %27 = vector.shape_cast %26 : vector<1x8x1xf32> to vector<8x1xf32>
    %28 = arith.mulf %13, %27 : vector<8x1xf32>
    %29 = arith.mulf %5, %16 : vector<8x16xf32>
    %cst_19 = arith.constant dense<0.000000e+00> : vector<8xf32>
    %30 = vector.multi_reduction <add>, %29, %cst_19 [1] : vector<8x16xf32> to vector<8xf32>
    %31 = vector.shape_cast %30 : vector<8xf32> to vector<8x1xf32>
    %32 = arith.addf %28, %31 : vector<8x1xf32>
    %c0_20 = arith.constant 0 : index
    %c0_21 = arith.constant 0 : index
    %c0_22 = arith.constant 0 : index
    %33 = vector.load %arg7[%c0_20, %c0_21, %c0_22] : memref<2x8x1xf32, #tpu.memory_space<vmem>>, vector<1x8x1xf32>
    %34 = vector.shape_cast %33 : vector<1x8x1xf32> to vector<8x1xf32>
    %35 = vector.shape_cast %32 : vector<8x1xf32> to vector<1x8x1xf32>
    tpu.vector_store %arg7[%c0_20, %c0_21, %c0_22], %35 {strides = array<i32>} : memref<2x8x1xf32, #tpu.memory_space<vmem>>, vector<1x8x1xf32>,
    %c0_23 = arith.constant 0 : index
    %c0_24 = arith.constant 0 : index
    %c0_25 = arith.constant 0 : index
    %36 = vector.load %arg5[%c0_23, %c0_24, %c0_25] : memref<2x8x1xf32, #tpu.memory_space<vmem>>, vector<1x8x1xf32>
    %37 = vector.shape_cast %36 : vector<1x8x1xf32> to vector<8x1xf32>
    %38 = vector.shape_cast %11 : vector<8x1xf32> to vector<1x8x1xf32>
    tpu.vector_store %arg5[%c0_23, %c0_24, %c0_25], %38 {strides = array<i32>} : memref<2x8x1xf32, #tpu.memory_space<vmem>>, vector<1x8x1xf32>,
    %c1 = arith.constant 1 : index
    %c0_26 = arith.constant 0 : index
    %c0_27 = arith.constant 0 : index
    %39 = vector.load %arg3[%c1, %c0_26, %c0_27] : memref<2x8x16xf32, #tpu.memory_space<vmem>>, vector<1x8x16xf32>
    %40 = vector.shape_cast %39 : vector<1x8x16xf32> to vector<8x16xf32>
    %cst_28 = arith.constant dense<0.000000e+00> : vector<8x16xf32>
    %41 = tpu.matmul %3, %40, %cst_28 {dimension_numbers = #tpu.dot_dimension_numbers<[1], [0], [0], [1], [0, 0, 1, 1], [], []>} : vector<8x8xf32>, vector<8x16xf32>, vector<8x16xf32> -> vector<8x16xf32>
    %c1_29 = arith.constant 1 : index
    %c0_30 = arith.constant 0 : index
    %c0_31 = arith.constant 0 : index
    %42 = vector.load %arg5[%c1_29, %c0_30, %c0_31] : memref<2x8x1xf32, #tpu.memory_space<vmem>>, vector<1x8x1xf32>
    %43 = vector.shape_cast %42 : vector<1x8x1xf32> to vector<8x1xf32>
    %cst_32 = arith.constant dense<0xFF800000> : vector<8xf32>
    %44 = vector.multi_reduction <maximumf>, %41, %cst_32 [1] : vector<8x16xf32> to vector<8xf32>
    %45 = vector.shape_cast %44 : vector<8xf32> to vector<8x1xf32>
    %46 = arith.maximumf %43, %45 : vector<8x1xf32>
    %47 = arith.subf %43, %46 : vector<8x1xf32>
    %48 = math.exp %47 : vector<8x1xf32>
    %49 = vector.broadcast %46 : vector<8x1xf32> to vector<8x16xf32>
    %50 = arith.subf %41, %49 : vector<8x16xf32>
    %51 = math.exp %50 : vector<8x16xf32>
    %c1_33 = arith.constant 1 : index
    %c0_34 = arith.constant 0 : index
    %c0_35 = arith.constant 0 : index
    %52 = vector.load %arg6[%c1_33, %c0_34, %c0_35] : memref<2x8x1xf32, #tpu.memory_space<vmem>>, vector<1x8x1xf32>
    %53 = vector.shape_cast %52 : vector<1x8x1xf32> to vector<8x1xf32>
    %54 = arith.mulf %48, %53 : vector<8x1xf32>
    %cst_36 = arith.constant dense<0.000000e+00> : vector<8xf32>
    %55 = vector.multi_reduction <add>, %51, %cst_36 [1] : vector<8x16xf32> to vector<8xf32>
    %56 = vector.shape_cast %55 : vector<8xf32> to vector<8x1xf32>
    %57 = arith.addf %54, %56 : vector<8x1xf32>
    %c1_37 = arith.constant 1 : index
    %c0_38 = arith.constant 0 : index
    %c0_39 = arith.constant 0 : index
    %58 = vector.load %arg6[%c1_37, %c0_38, %c0_39] : memref<2x8x1xf32, #tpu.memory_space<vmem>>, vector<1x8x1xf32>
    %59 = vector.shape_cast %58 : vector<1x8x1xf32> to vector<8x1xf32>
    %60 = vector.shape_cast %57 : vector<8x1xf32> to vector<1x8x1xf32>
    tpu.vector_store %arg6[%c1_37, %c0_38, %c0_39], %60 {strides = array<i32>} : memref<2x8x1xf32, #tpu.memory_space<vmem>>, vector<1x8x1xf32>,
    %c1_40 = arith.constant 1 : index
    %c0_41 = arith.constant 0 : index
    %c0_42 = arith.constant 0 : index
    %61 = vector.load %arg7[%c1_40, %c0_41, %c0_42] : memref<2x8x1xf32, #tpu.memory_space<vmem>>, vector<1x8x1xf32>
    %62 = vector.shape_cast %61 : vector<1x8x1xf32> to vector<8x1xf32>
    %63 = arith.mulf %48, %62 : vector<8x1xf32>
    %64 = arith.mulf %40, %51 : vector<8x16xf32>
    %cst_43 = arith.constant dense<0.000000e+00> : vector<8xf32>
    %65 = vector.multi_reduction <add>, %64, %cst_43 [1] : vector<8x16xf32> to vector<8xf32>
    %66 = vector.shape_cast %65 : vector<8xf32> to vector<8x1xf32>
    %67 = arith.addf %63, %66 : vector<8x1xf32>
    %c1_44 = arith.constant 1 : index
    %c0_45 = arith.constant 0 : index
    %c0_46 = arith.constant 0 : index
    %68 = vector.load %arg7[%c1_44, %c0_45, %c0_46] : memref<2x8x1xf32, #tpu.memory_space<vmem>>, vector<1x8x1xf32>
    %69 = vector.shape_cast %68 : vector<1x8x1xf32> to vector<8x1xf32>
    %70 = vector.shape_cast %67 : vector<8x1xf32> to vector<1x8x1xf32>
    tpu.vector_store %arg7[%c1_44, %c0_45, %c0_46], %70 {strides = array<i32>} : memref<2x8x1xf32, #tpu.memory_space<vmem>>, vector<1x8x1xf32>,
    %c1_47 = arith.constant 1 : index
    %c0_48 = arith.constant 0 : index
    %c0_49 = arith.constant 0 : index
    %71 = vector.load %arg5[%c1_47, %c0_48, %c0_49] : memref<2x8x1xf32, #tpu.memory_space<vmem>>, vector<1x8x1xf32>
    %72 = vector.shape_cast %71 : vector<1x8x1xf32> to vector<8x1xf32>
    %73 = vector.shape_cast %46 : vector<8x1xf32> to vector<1x8x1xf32>
    tpu.vector_store %arg5[%c1_47, %c0_48, %c0_49], %73 {strides = array<i32>} : memref<2x8x1xf32, #tpu.memory_space<vmem>>, vector<1x8x1xf32>,
    %c0_i32_50 = arith.constant 0 : i32
    %74 = arith.cmpi eq, %arg1, %c0_i32_50 : i32
    %75 = arith.extui %74 : i1 to i32
    %c0_i32_51 = arith.constant 0 : i32
    %76 = arith.cmpi ne, %75, %c0_i32_51 : i32
    scf.if %76 {
      %c0_52 = arith.constant 0 : index
      %c0_53 = arith.constant 0 : index
      %c0_54 = arith.constant 0 : index
      %77 = vector.load %arg7[%c0_52, %c0_53, %c0_54] : memref<2x8x1xf32, #tpu.memory_space<vmem>>, vector<2x8x1xf32>
      %c0_55 = arith.constant 0 : index
      %c0_56 = arith.constant 0 : index
      %c0_57 = arith.constant 0 : index
      %78 = vector.load %arg6[%c0_55, %c0_56, %c0_57] : memref<2x8x1xf32, #tpu.memory_space<vmem>>, vector<2x8x1xf32>
      %79 = tpu.reciprocal %78 : vector<2x8x1xf32> -> vector<2x8x1xf32>
      %80 = arith.mulf %77, %79 : vector<2x8x1xf32>
      %c0_58 = arith.constant 0 : index
      %c0_59 = arith.constant 0 : index
      %c0_60 = arith.constant 0 : index
      %81 = vector.load %arg4[%c0_58, %c0_59, %c0_60] : memref<2x8x1xf32, #tpu.memory_space<vmem>>, vector<2x8x1xf32>
      tpu.vector_store %arg4[%c0_58, %c0_59, %c0_60], %80 {strides = array<i32>} : memref<2x8x1xf32, #tpu.memory_space<vmem>>, vector<2x8x1xf32>,
    } else {
    }
    return
  }
  func.func @transform_0(%arg0: i32, %arg1: i32) -> (i32, i32) {
    %c0_i32 = arith.constant 0 : i32
    %c0_i32_0 = arith.constant 0 : i32
    %c0_i32_1 = arith.constant 0 : i32
    return %c0_i32, %c0_i32_0 : i32, i32
  }
  func.func @transform_1(%arg0: i32, %arg1: i32) -> (i32, i32, i32) {
    %c0_i32 = arith.constant 0 : i32
    %c0_i32_0 = arith.constant 0 : i32
    return %arg0, %c0_i32, %arg1 : i32, i32, i32
  }
  func.func @transform_2(%arg0: i32, %arg1: i32) -> (i32, i32, i32) {
    %c0_i32 = arith.constant 0 : i32
    %c0_i32_0 = arith.constant 0 : i32
    %c0_i32_1 = arith.constant 0 : i32
    return %arg0, %c0_i32, %c0_i32_0 : i32, i32, i32
  }
}

</mosaic_0001>

<llo_original>
// kernel: tpu_custom_call.1
$region0: #{tpu_custom_call.1}
  #allocation0 [shape = 'u32[]', space=smem, size = 0x4, offset = 0x4, fixed_abs, tag = 'smem constant byte address 0x4 - core index']
  #allocation1 [shape = 'u32[72,128]{1,0:T(1,128)}', space=vmem, size = 0x9000, scoped, tag = 'internal scratch']
  #allocation2 [shape = 'f32[2,8,1]{2,1,0:T(8,128)}', space=vmem, size = 0x2000, scoped, tag = 'scratch operand']
  #allocation3 [shape = 'f32[2,8,1]{2,1,0:T(8,128)}', space=vmem, size = 0x2000, scoped, tag = 'scratch operand']
  #allocation4 [shape = 'f32[2,8,1]{2,1,0:T(8,128)}', space=vmem, size = 0x2000, scoped, tag = 'scratch operand']
  %s0 = inlined_call_operand.hbm [shape: f32[8,8], index: 0, kind: input, shape index: {}]
  %s1 = inlined_call_operand.hbm [shape: f32[2,8,16], index: 1, kind: input, shape index: {}]
  %s2 = inlined_call_operand.vmem [shape: f32[2,8,1], index: 2, kind: output, shape index: {}]
  %s3 = sld [smem:[#allocation0]]
  $region34: #{tpu_custom_call.1} parent=0
    _
  %s5 = ssub.s32 1, %s3
  %s6 = scalar_select 0, %s5, %s3
  $region1: #{tpu_custom_call.1} parent=0
    #allocation5 [shape = 'u8[4096]{0}', space=vmem, size = 0x1000, scoped, tag = 'input window, operand 0, single buffered']
    #allocation6 [shape = 's32[1]{0}', space=sflag, size = 0x4, scoped, tag = 'scoped memory for tpu_custom_call.1']
    #allocation7 [shape = 'u8[8192]{0}', space=vmem, size = 0x2000, scoped, tag = 'input window, operand 1, single buffered']
    #allocation8 [shape = 's32[1]{0}', space=sflag, size = 0x4, scoped, tag = 'scoped memory for tpu_custom_call.1']
    %7 = vsyncpa [#allocation6], 0
    %8 = vsyncpa [#allocation8], 0
    // Predicated region
    $region2: #{tpu_custom_call.1} parent=1 // pred_check
      _
    $region3: #{tpu_custom_call.1} parent=1 // pred_check_branch
      %10 = sbr.rel (0) target = $region5
    $region4: #{tpu_custom_call.1} parent=1 // pred_region
      %12 = vsyncadd [#allocation6], 0
      %s14 = sshll.u32 %s0, 4
      %s15 = int_to_ptr.hbm [resolvable:$true] %s14
      %s16 = sshll.u32 [#allocation5], 4
      %s17 = int_to_ptr.vmem [resolvable:$true] %s16
      %19 = dma.hbm_to_vmem [thread:$0]  %s15, 128, %s17, [#allocation6]
    $region5: #{tpu_custom_call.1} parent=1 // pred_fallthru
      _
    // Predicated region
    $region6: #{tpu_custom_call.1} parent=1 // pred_check
      _
    $region7: #{tpu_custom_call.1} parent=1 // pred_check_branch
      %21 = sbr.rel (0) target = $region9
    $region8: #{tpu_custom_call.1} parent=1 // pred_region
      %23 = vsyncadd [#allocation8], 0
      %s24 = sshll.u32 %s1, 4
      %s25 = int_to_ptr.hbm [resolvable:$true] %s24
      %s26 = sshll.u32 [#allocation7], 4
      %s27 = int_to_ptr.vmem [resolvable:$true] %s26
      %32 = dma.hbm_to_vmem [thread:$0]  %s25, 256, %s27, [#allocation8], 128, 128, 8
    $region9: #{tpu_custom_call.1} parent=1 // pred_fallthru
      _
    // Predicated region
    $region10: #{tpu_custom_call.1} parent=1 // pred_check
      _
    $region11: #{tpu_custom_call.1} parent=1 // pred_check_branch
      %34 = sbr.rel (0) target = $region13
    $region12: #{tpu_custom_call.1} parent=1 // pred_region
      %36 = dma.done [#allocation6], 128
    $region13: #{tpu_custom_call.1} parent=1 // pred_fallthru
      _
    // Predicated region
    $region14: #{tpu_custom_call.1} parent=1 // pred_check
      _
    $region15: #{tpu_custom_call.1} parent=1 // pred_check_branch
      %38 = sbr.rel (0) target = $region17
    $region16: #{tpu_custom_call.1} parent=1 // pred_region
      %40 = dma.done [#allocation8], 256
    $region17: #{tpu_custom_call.1} parent=1 // pred_fallthru
      _
    %p41 = scmp.eq.s32.totalorder 0, 0
    // Predicated region
    $region18: #{tpu_custom_call.1} parent=1 // pred_check
      %p42 = pneg %p41
    $region19: #{tpu_custom_call.1} parent=1 // pred_check_branch
      %44 = sbr.rel (%p42) target = $region21
    $region20: #{tpu_custom_call.1} parent=1 // pred_region
      %vm45 = vcmask 7168
      %46 = vst.msk [vmem:[#allocation2] sm:$0xff] %vm45, -inf
      %47 = vst.msk [vmem:[#allocation2 + $0x8] sm:$0xff] %vm45, -inf
      %48 = vst.msk [vmem:[#allocation3] sm:$0xff] %vm45, 0.0
      %49 = vst.msk [vmem:[#allocation3 + $0x8] sm:$0xff] %vm45, 0.0
      %50 = vst.msk [vmem:[#allocation4] sm:$0xff] %vm45, 0.0
      %51 = vst.msk [vmem:[#allocation4 + $0x8] sm:$0xff] %vm45, 0.0
    $region21: #{tpu_custom_call.1} parent=1 // pred_fallthru
      _
    %v52 = vld [vmem:[#allocation5] sm:$0xff]
    %v53 = vld [vmem:[#allocation7] sm:$0xff]
    %vm54 = vcmask 64512
    %v56 = vsel %vm54, %v52, 0
    %58 = vmatpush.msra.mxu0 0.0
    %59 = vmatpush.msra.mxu0 0.0
    %60 = vmatpush.msra.mxu0 0.0
    %61 = vmatpush.msra.mxu0 0.0
    %62 = vmatpush.msra.mxu0 0.0
    %63 = vmatpush.msra.mxu0 0.0
    %64 = vmatpush.msra.mxu0 0.0
    %65 = vmatpush.msra.mxu0 0.0
    %66 = vmatpush.msra.mxu0 0.0
    %67 = vmatpush.msra.mxu0 0.0
    %68 = vmatpush.msra.mxu0 0.0
    %69 = vmatpush.msra.mxu0 0.0
    %70 = vmatpush.msra.mxu0 0.0
    %71 = vmatpush.msra.mxu0 0.0
    %72 = vmatpush.msra.mxu0 0.0
    %73 = vmatpush.msra.mxu0 %v53
    %74 = vmatmul.f32.gmra.mxu0 %v56
    %v75 = vpop.f32.mrf.mxu0
    %v76 = vadd.f32 0.0, %v75
    %77 = vdwg.mxu0
    %v78 = vld [vmem:[#allocation2] sm:$0xff]
    %vm79 = vcmask 130048
    %v80 = vsel %vm79, %v76, -inf
    %81 = vmax.xlane.f32.xlu0 %v80
    %v82 = vpop.xlane.xlu0 %81
    %v83 = vmax.f32 %v78, %v82
    %v84 = vsub.f32 %v78, %v83
    %v85 = vmul.f32 %v84, 1.442695
    %v86 = vpow.pop %v85
    %88 = vset.pattern.permute.xlu0 0
    %89 = vperm.xlu0 %88, %v83
    %v90 = vpop.permute.xlu0 %89
    %v92 = vsub.f32 %v76, %v90
    %v93 = vmul.f32 %v92, 1.442695
    %v94 = vpow.pop %v93
    %v95 = vld [vmem:[#allocation3] sm:$0xff]
    %v96 = vmul.f32 %v86, %v95
    %v97 = vsel %vm79, %v94, 0.0
    %98 = vadd.xlane.f32.xlu0 %v97
    %v99 = vpop.xlane.xlu0 %98
    %v100 = vadd.f32 %v96, %v99
    %vm101 = vcmask 7168
    %102 = vst.msk [vmem:[#allocation3] sm:$0xff] %vm101, %v100
    %v103 = vld [vmem:[#allocation4] sm:$0xff]
    %v104 = vmul.f32 %v86, %v103
    %v105 = vmul.f32 %v53, %v94
    %v106 = vsel %vm79, %v105, 0.0
    %107 = vadd.xlane.f32.xlu0 %v106
    %v108 = vpop.xlane.xlu0 %107
    %v109 = vadd.f32 %v104, %v108
    %110 = vst.msk [vmem:[#allocation4] sm:$0xff] %vm101, %v109
    %111 = vst.msk [vmem:[#allocation2] sm:$0xff] %vm101, %v83
    %s112 = scalar_lea.vmem [#allocation7], 8
    %v113 = vld [vmem:[%s112] sm:$0xff]
    %114 = vmatpush.msra.mxu0 0.0
    %115 = vmatpush.msra.mxu0 0.0
    %116 = vmatpush.msra.mxu0 0.0
    %117 = vmatpush.msra.mxu0 0.0
    %118 = vmatpush.msra.mxu0 0.0
    %119 = vmatpush.msra.mxu0 0.0
    %120 = vmatpush.msra.mxu0 0.0
    %121 = vmatpush.msra.mxu0 0.0
    %122 = vmatpush.msra.mxu0 0.0
    %123 = vmatpush.msra.mxu0 0.0
    %124 = vmatpush.msra.mxu0 0.0
    %125 = vmatpush.msra.mxu0 0.0
    %126 = vmatpush.msra.mxu0 0.0
    %127 = vmatpush.msra.mxu0 0.0
    %128 = vmatpush.msra.mxu0 0.0
    %129 = vmatpush.msra.mxu0 %v113
    %130 = vmatmul.f32.gmra.mxu0 %v56
    %v131 = vpop.f32.mrf.mxu0
    %v132 = vadd.f32 0.0, %v131
    %133 = vdwg.mxu0
    %s134 = scalar_lea.vmem [#allocation2], 8
    %v135 = vld [vmem:[%s134] sm:$0xff]
    %v136 = vsel %vm79, %v132, -inf
    %137 = vmax.xlane.f32.xlu0 %v136
    %v138 = vpop.xlane.xlu0 %137
    %v139 = vmax.f32 %v135, %v138
    %v140 = vsub.f32 %v135, %v139
    %v141 = vmul.f32 %v140, 1.442695
    %v142 = vpow.pop %v141
    %144 = vset.pattern.permute.xlu0 0
    %145 = vperm.xlu0 %144, %v139
    %v146 = vpop.permute.xlu0 %145
    %v148 = vsub.f32 %v132, %v146
    %v149 = vmul.f32 %v148, 1.442695
    %v150 = vpow.pop %v149
    %s151 = scalar_lea.vmem [#allocation3], 8
    %v152 = vld [vmem:[%s151] sm:$0xff]
    %v153 = vmul.f32 %v142, %v152
    %v154 = vsel %vm79, %v150, 0.0
    %155 = vadd.xlane.f32.xlu0 %v154
    %v156 = vpop.xlane.xlu0 %155
    %v157 = vadd.f32 %v153, %v156
    %158 = vst.msk [vmem:[%s151] sm:$0xff] %vm101, %v157
    %s159 = scalar_lea.vmem [#allocation4], 8
    %v160 = vld [vmem:[%s159] sm:$0xff]
    %v161 = vmul.f32 %v142, %v160
    %v162 = vmul.f32 %v113, %v150
    %v163 = vsel %vm79, %v162, 0.0
    %164 = vadd.xlane.f32.xlu0 %v163
    %v165 = vpop.xlane.xlu0 %164
    %v166 = vadd.f32 %v161, %v165
    %167 = vst.msk [vmem:[%s159] sm:$0xff] %vm101, %v166
    %168 = vst.msk [vmem:[%s134] sm:$0xff] %vm101, %v139
    // Predicated region
    $region22: #{tpu_custom_call.1} parent=1 // pred_check
      %p169 = pneg %p41
    $region23: #{tpu_custom_call.1} parent=1 // pred_check_branch
      %171 = sbr.rel (%p169) target = $region25
    $region24: #{tpu_custom_call.1} parent=1 // pred_region
      %v172 = vld [vmem:[#allocation4] sm:$0xff]
      %v173 = vld [vmem:[#allocation4 + $0x8] sm:$0xff]
      %v174 = vld [vmem:[#allocation3] sm:$0xff]
      %v175 = vld [vmem:[#allocation3 + $0x8] sm:$0xff]
      %v176 = vrcp.pop %v174
      %v177 = vmul.f32 %v174, %v176
      %v178 = vsub.f32 1.0, %v177
      %v179 = vmul.f32 %v176, %v178
      %v180 = vadd.f32 %v176, %v179
      %vm181 = vweird.f32 %v174
      %vm182 = vweird.f32 %v176
      %vm183 = vmor %vm181, %vm182
      %v184 = vsel %vm183, %v176, %v180
      %v185 = vand.u32 2147483647, %v174
      %vm186 = vcmp.eq.f32.partialorder %v185, 8.507059e+37
      %v187 = vand.u32 %v174, 2147483648
      %v188 = vor.u32 1.1754944e-38, %v187
      %v189 = vsel %vm186, %v188, %v184
      %v190 = vrcp.pop %v175
      %v191 = vmul.f32 %v175, %v190
      %v192 = vsub.f32 1.0, %v191
      %v193 = vmul.f32 %v190, %v192
      %v194 = vadd.f32 %v190, %v193
      %vm195 = vweird.f32 %v175
      %vm196 = vweird.f32 %v190
      %vm197 = vmor %vm195, %vm196
      %v198 = vsel %vm197, %v190, %v194
      %v199 = vand.u32 2147483647, %v175
      %vm200 = vcmp.eq.f32.partialorder %v199, 8.507059e+37
      %v201 = vand.u32 %v175, 2147483648
      %v202 = vor.u32 1.1754944e-38, %v201
      %v203 = vsel %vm200, %v202, %v198
      %v204 = vmul.f32 %v172, %v189
      %v205 = vmul.f32 %v173, %v203
      %206 = vst.msk [vmem:[%s2] sm:$0xff] %vm101, %v204
      %207 = vst.msk [vmem:[%s2 + $0x8] sm:$0xff] %vm101, %v205
    $region25: #{tpu_custom_call.1} parent=1 // pred_fallthru
      _
    // Predicated region
    $region26: #{tpu_custom_call.1} parent=1 // pred_check
      _
    $region27: #{tpu_custom_call.1} parent=1 // pred_check_branch
      %209 = sbr.rel (0) target = $region29
    $region28: #{tpu_custom_call.1} parent=1 // pred_region
      _
    $region29: #{tpu_custom_call.1} parent=1 // pred_fallthru
      _
    // Predicated region
    $region30: #{tpu_custom_call.1} parent=1 // pred_check
      _
    $region31: #{tpu_custom_call.1} parent=1 // pred_check_branch
      %211 = sbr.rel (0) target = $region33
    $region32: #{tpu_custom_call.1} parent=1 // pred_region
      _
    $region33: #{tpu_custom_call.1} parent=1 // pred_fallthru
      _
    %212 = vsyncpa [#allocation6], 1
    %213 = vsyncpa [#allocation8], 1

</llo_original>
